<compile_context>
chip_gen: v6e
topology: v6e:2x2x1
jax: 0.10.0
libtpu: 0.0.40
codegen_flags: <defaults>
</compile_context>

<pallas_src>
import numpy as np
import jax
import jax.numpy as jnp
from jax.experimental import pallas as pl
from jax.experimental.pallas import tpu as pltpu

ALPHA = 0.5
THETA = 1.0

_LANE = 128
_MAX_TILE_ROWS = 2048  # 2048 * 128 * 4B = 1 MiB per tile; 3 arrays x 2 bufs ~= 6 MiB VMEM


def _pad_to(n, m):
    return ((n + m - 1) // m) * m


def _mix_x_kernel(idx_ref, lam_ref, x_ref, xp_ref, xo_ref):
    # idx_ref was consumed by the index_maps; lam comes from SMEM scalar prefetch.
    del idx_ref
    lam = lam_ref[0]
    # Pure element-wise mix on a lane-dense (1, TR, 128) tile (mem-bound hot path).
    xo_ref[...] = lam * x_ref[...] + (1.0 - lam) * xp_ref[...]


def _mix_y_kernel(idx_ref, lam_ref, y_ref, yp_ref, yo_ref):
    del idx_ref
    lam = lam_ref[0]
    y_mix = lam * y_ref[...] + (1.0 - lam) * yp_ref[...]
    # y[y > theta] = 1
    yo_ref[...] = jnp.where(y_mix > THETA, jnp.float32(1.0), y_mix)


def mixup(x, y, lam, idx):
    """x: (B, C, H, W) float32; y: (B, NC) float32; lam: (1,) float32; idx: (B,) int32."""
    B = x.shape[0]
    chw = int(np.prod(x.shape[1:]))
    NC = y.shape[1]

    # ---------------- x path: lane-dense flattened layout ----------------
    chw_pad = _pad_to(chw, _LANE)
    rows = chw_pad // _LANE
    tr = rows if rows <= _MAX_TILE_ROWS else _MAX_TILE_ROWS
    rows_pad = _pad_to(rows, tr)
    n_row_tiles = rows_pad // tr

    xf = x.reshape(B, chw)
    if rows_pad * _LANE != chw:
        xf = jnp.pad(xf, ((0, 0), (0, rows_pad * _LANE - chw)))
    x3 = xf.reshape(B, rows_pad, _LANE)

    # index_maps receive (grid indices..., *prefetch_refs) = (b, r, idx_ref, lam_ref)
    x_id_spec = pl.BlockSpec((1, tr, _LANE), lambda b, r, idx, lam: (b, r, 0))
    x_pm_spec = pl.BlockSpec((1, tr, _LANE), lambda b, r, idx, lam: (idx[b], r, 0))
    x_out_spec = pl.BlockSpec((1, tr, _LANE), lambda b, r, idx, lam: (b, r, 0))

    x_cost = pl.CostEstimate(
        flops=3 * B * rows_pad * _LANE,
        transcendentals=0,
        bytes_accessed=3 * B * rows_pad * _LANE * 4,  # 2 reads of x + 1 write
    )

    x_out3 = pl.pallas_call(
        _mix_x_kernel,
        grid_spec=pltpu.PrefetchScalarGridSpec(
            num_scalar_prefetch=2,
            grid=(B, n_row_tiles),
            in_specs=[x_id_spec, x_pm_spec],
            out_specs=x_out_spec,
        ),
        out_shape=jax.ShapeDtypeStruct((B, rows_pad, _LANE), jnp.float32),
        compiler_params=pltpu.CompilerParams(
            dimension_semantics=("parallel", "parallel")),
        cost_estimate=x_cost,
    )(idx, lam, x3, x3)

    x_out = x_out3.reshape(B, rows_pad * _LANE)[:, :chw].reshape(x.shape)

    # ---------------- y path: tiny, kept out of the hot x grid ----------------
    nc_pad = _pad_to(NC, _LANE)
    yf = y if nc_pad == NC else jnp.pad(y, ((0, 0), (0, nc_pad - NC)))
    y3 = yf.reshape(B, 1, nc_pad)

    y_id_spec = pl.BlockSpec((1, 1, nc_pad), lambda b, idx, lam: (b, 0, 0))
    y_pm_spec = pl.BlockSpec((1, 1, nc_pad), lambda b, idx, lam: (idx[b], 0, 0))
    y_out_spec = pl.BlockSpec((1, 1, nc_pad), lambda b, idx, lam: (b, 0, 0))

    y_out3 = pl.pallas_call(
        _mix_y_kernel,
        grid_spec=pltpu.PrefetchScalarGridSpec(
            num_scalar_prefetch=2,
            grid=(B,),
            in_specs=[y_id_spec, y_pm_spec],
            out_specs=y_out_spec,
        ),
        out_shape=jax.ShapeDtypeStruct((B, 1, nc_pad), jnp.float32),
        compiler_params=pltpu.CompilerParams(
            dimension_semantics=("parallel",)),
    )(idx, lam, y3, y3)

    y_out = y_out3.reshape(B, nc_pad)[:, :NC]
    return x_out, y_out


if __name__ == "__main__":
    key = jax.random.PRNGKey(0)
    kx, ky, kperm = jax.random.split(key, 3)

    B, C, H, W = 2, 4, 16, 16
    NUM_CLASSES = 8

    x = jax.random.normal(kx, (B, C, H, W), dtype=jnp.float32)
    # soft labels in [0, 2) so the y > theta clamp actually triggers
    y = jax.random.uniform(ky, (B, NUM_CLASSES), dtype=jnp.float32, maxval=2.0)

    # host-side randomness (glue), deterministic: lam ~ Beta(alpha, alpha), lam = max(lam, 1-lam)
    rng = np.random.default_rng(0)
    lam_val = float(rng.beta(ALPHA, ALPHA))
    lam_val = max(lam_val, 1.0 - lam_val)
    lam = jnp.array([lam_val], dtype=jnp.float32)

    idx = jax.random.permutation(kperm, B).astype(jnp.int32)

    x_out, y_out = mixup(x, y, lam, idx)
    jax.block_until_ready((x_out, y_out))

    # reference check in plain JAX
    x_ref = lam_val * x + (1.0 - lam_val) * x[idx]
    y_ref = lam_val * y + (1.0 - lam_val) * y[idx]
    y_ref = jnp.where(y_ref > THETA, 1.0, y_ref)
    assert jnp.allclose(x_out, x_ref, atol=1e-6), "x mismatch"
    assert jnp.allclose(y_out, y_ref, atol=1e-6), "y mismatch"

    print("KERNEL_OK")
</pallas_src>

<mosaic_0001>
module attributes {stable_mosaic.version = 11 : i64} {
  func.func @_mix_x_kernel(%arg0: i32, %arg1: i32, %arg2: memref<2xi32, #tpu.memory_space<smem>>, %arg3: memref<1xf32, #tpu.memory_space<smem>>, %arg4: memref<1x8x128xf32, #tpu.memory_space<vmem>>, %arg5: memref<1x8x128xf32, #tpu.memory_space<vmem>>, %arg6: memref<1x8x128xf32, #tpu.memory_space<vmem>>) attributes {dimension_semantics = [#tpu.dimension_semantics<parallel>, #tpu.dimension_semantics<parallel>], iteration_bounds = array<i64: 2, 1>, scalar_prefetch = 2 : i64, scratch_operands = 0 : i64, tpu.core_type = #tpu.core_type<tc>, window_params = [{transform_indices = @transform_0, window_bounds = array<i64: 1, 8, 128>}, {transform_indices = @transform_1, window_bounds = array<i64: 1, 8, 128>}, {transform_indices = @transform_2, window_bounds = array<i64: 1, 8, 128>}]} {
    %c0 = arith.constant 0 : index
    %0 = memref.load %arg3[%c0] : memref<1xf32, #tpu.memory_space<smem>>
    %c0_0 = arith.constant 0 : index
    %c0_1 = arith.constant 0 : index
    %c0_2 = arith.constant 0 : index
    %1 = vector.load %arg4[%c0_0, %c0_1, %c0_2] : memref<1x8x128xf32, #tpu.memory_space<vmem>>, vector<1x8x128xf32>
    %2 = vector.broadcast %0 : f32 to vector<1x8x128xf32>
    %3 = arith.mulf %2, %1 : vector<1x8x128xf32>
    %cst = arith.constant 1.000000e+00 : f32
    %4 = arith.subf %cst, %0 : f32
    %c0_3 = arith.constant 0 : index
    %c0_4 = arith.constant 0 : index
    %c0_5 = arith.constant 0 : index
    %5 = vector.load %arg5[%c0_3, %c0_4, %c0_5] : memref<1x8x128xf32, #tpu.memory_space<vmem>>, vector<1x8x128xf32>
    %6 = vector.broadcast %4 : f32 to vector<1x8x128xf32>
    %7 = arith.mulf %6, %5 : vector<1x8x128xf32>
    %8 = arith.addf %3, %7 : vector<1x8x128xf32>
    %c0_6 = arith.constant 0 : index
    %c0_7 = arith.constant 0 : index
    %c0_8 = arith.constant 0 : index
    %9 = vector.load %arg6[%c0_6, %c0_7, %c0_8] : memref<1x8x128xf32, #tpu.memory_space<vmem>>, vector<1x8x128xf32>
    tpu.vector_store %arg6[%c0_6, %c0_7, %c0_8], %8 {strides = array<i32>} : memref<1x8x128xf32, #tpu.memory_space<vmem>>, vector<1x8x128xf32>,
    return
  }
  func.func @transform_0(%arg0: i32, %arg1: i32, %arg2: memref<2xi32, #tpu.memory_space<smem>>, %arg3: memref<1xf32, #tpu.memory_space<smem>>) -> (i32, i32, i32) {
    %c0_i32 = arith.constant 0 : i32
    %c0_i32_0 = arith.constant 0 : i32
    return %arg0, %arg1, %c0_i32 : i32, i32, i32
  }
  func.func @transform_1(%arg0: i32, %arg1: i32, %arg2: memref<2xi32, #tpu.memory_space<smem>>, %arg3: memref<1xf32, #tpu.memory_space<smem>>) -> (i32, i32, i32) {
    %0 = arith.index_cast %arg0 : i32 to index
    %1 = memref.load %arg2[%0] : memref<2xi32, #tpu.memory_space<smem>>
    %c0_i32 = arith.constant 0 : i32
    %c0_i32_0 = arith.constant 0 : i32
    return %1, %arg1, %c0_i32 : i32, i32, i32
  }
  func.func @transform_2(%arg0: i32, %arg1: i32, %arg2: memref<2xi32, #tpu.memory_space<smem>>, %arg3: memref<1xf32, #tpu.memory_space<smem>>) -> (i32, i32, i32) {
    %c0_i32 = arith.constant 0 : i32
    %c0_i32_0 = arith.constant 0 : i32
    return %arg0, %arg1, %c0_i32 : i32, i32, i32
  }
}

</mosaic_0001>

<llo_original>
// kernel: tpu_custom_call.1
$region0: #{tpu_custom_call.1}
  #allocation0 [shape = 'u32[]', space=smem, size = 0x4, offset = 0x4, fixed_abs, tag = 'smem constant byte address 0x4 - core index']
  #allocation1 [shape = 'u32[144,128]{1,0:T(1,128)}', space=vmem, size = 0x12000, scoped, tag = 'internal scratch']
  #allocation2 [shape = 's32[1]{0}', space=sflag, size = 0x4, scoped, tag = 'scoped memory for tpu_custom_call.1']
  #allocation3 [shape = 'u8[512]{0}', space=smem, size = 0x200, scoped, tag = 'prefetched SMEM operand 0']
  #allocation4 [shape = 'f32[1]{0:T(128)S(6)}', space=smem, size = 0x200, scoped, tag = 'prefetched SMEM operand 1']
  %s0 = inlined_call_operand.vmem [shape: s32[2], index: 0, kind: input, shape index: {}]
  %s1 = inlined_call_operand.<no memory space> [shape: f32[1], index: 1, kind: input, shape index: {}]
  %s2 = inlined_call_operand.hbm [shape: f32[2,8,128], index: 2, kind: input, shape index: {}]
  %s3 = inlined_call_operand.hbm [shape: f32[2,8,128], index: 3, kind: input, shape index: {}]
  %s4 = inlined_call_operand.hbm [shape: f32[2,8,128], index: 4, kind: output, shape index: {}]
  %s5 = sld [smem:[#allocation0]]
  $region49: #{tpu_custom_call.1} parent=0
    _
  %s7 = ssub.s32 1, %s5
  %s8 = scalar_select 0, %s7, %s5
  %s9 = sshll.u32 %s0, 4
  %s10 = int_to_ptr.vmem [resolvable:$true] %s9
  %12 = dma.vmem_to_smem %s10, 16, [#allocation3], [#allocation2]
  %13 = sst [smem:[#allocation4]] %s1
  %14 = dma.done [#allocation2], 16
  %15 = sfence
  $region1: #{tpu_custom_call.1} parent=0
    #allocation5 [shape = 'u8[8192]{0}', space=vmem, size = 0x2000, scoped, tag = 'input window, operand 2']
    #allocation6 [shape = 's32[2]{0}', space=sflag, size = 0x8, scoped, tag = 'scoped memory for tpu_custom_call.1']
    #allocation7 [shape = 's32[2]{0}', space=sflag, size = 0x8, scoped, tag = 'scoped memory for tpu_custom_call.1']
    #allocation8 [shape = 'u8[8192]{0}', space=vmem, size = 0x2000, scoped, tag = 'input window, operand 3']
    #allocation9 [shape = 's32[2]{0}', space=sflag, size = 0x8, scoped, tag = 'scoped memory for tpu_custom_call.1']
    #allocation10 [shape = 'u8[8192]{0}', space=vmem, size = 0x2000, scoped, tag = 'output window, operand 0']
    %16 = vsyncpa [#allocation6], 0
    %s17 = scalar_lea.sflag [#allocation6], 1
    %18 = vsyncpa %s17, 0
    %19 = vsyncpa [#allocation9], 0
    %s20 = scalar_lea.sflag [#allocation9], 1
    %21 = vsyncpa %s20, 0
    %22 = vsyncpa [#allocation7], 0
    %s23 = scalar_lea.sflag [#allocation7], 1
    %24 = vsyncpa %s23, 0
    loop: start=0, step=1, limit=4
    $region2: #{tpu_custom_call.1} parent=1 // loop_pre_header
      _
    $region3: #{tpu_custom_call.1} parent=1 // loop_header
      %s26 = sphi 0, %s30
      %p27 = scmp.ge.s32.totalorder %s26, 4
      %s33 = sphi 0, %s45
      %s34 = sphi 0, %s41
      %s35 = sphi 0, %s33
      %s36 = sphi 0, %s34
      %s37 = sphi 0, %s35
      %s38 = sphi 0, %s36
      %s50 = sphi 0, %s52
      %s53 = sphi 0, %s50
      %s54 = sphi 0, %s53
      %s70 = sphi 0, %s54
      %s80 = sphi 0, %s82
      %s83 = sphi 0, %s80
      %s84 = sphi 0, %s83
      %s100 = sphi 0, %s84
      %s108 = sphi 0, %s110
      %s111 = sphi 0, %s108
      %s112 = sphi 0, %s111
      %s128 = sphi 0, %s112
    $region4: #{tpu_custom_call.1} parent=1 // loop_header_branch
      %29 = sbr.rel (%p27) target = $region8
    $region5: #{tpu_custom_call.1} parent=1 // loop_body
      %s31 = ssub.s32 %s26, 1
      %s32 = ssub.s32 %s26, 2
      %s39 = sadd.s32 1, %s34
      %p40 = scmp.ge.s32.totalorder %s39, 1
      %s41 = scalar_select %p40, 0, %s39
      %s42 = sadd.s32 1, %s33
      %s43 = scalar_select %p40, %s42, %s33
      %p44 = scmp.ge.s32.totalorder %s43, 2
      %s45 = scalar_select %p44, 0, %s43
      %s46 = ssub.s32 %s33, %s45
      %s47 = ssub.s32 %s34, %s41
      %s48 = sor.u32 %s46, %s47
      %p49 = scmp.eq.s32.totalorder %s48, 0
      %s51 = sadd.s32 %s50, 1
      %s52 = scalar_select %p49, %s50, %s51
      %p55 = pneg %p49
      %p56 = scmp.eq.s32.totalorder %s26, 1
      %p57 = por %p55, %p56
      %p58 = scmp.ne.s32.totalorder %s50, %s53
      %p59 = scmp.eq.s32.totalorder %s26, 0
      %p60 = por %p58, %p59
      %p61 = scmp.ne.s32.totalorder %s50, %s53
      %p62 = scmp.eq.s32.totalorder %s31, 1
      %p63 = por %p61, %p62
      %p64 = scmp.ne.s32.totalorder %s53, %s54
      %p65 = scmp.eq.s32.totalorder %s31, 0
      %p66 = por %p64, %p65
      %p67 = scmp.ne.s32.totalorder %s53, %s54
      %p68 = scmp.eq.s32.totalorder %s32, 1
      %p69 = por %p67, %p68
      %p71 = scmp.ne.s32.totalorder %s54, %s70
      %p72 = scmp.eq.s32.totalorder %s32, 0
      %p73 = por %p71, %p72
      %s74 = sld [smem:[#allocation3 + %s33]]
      %s75 = sld [smem:[#allocation3 + %s45]]
      %s76 = ssub.s32 %s74, %s75
      %s77 = ssub.s32 %s34, %s41
      %s78 = sor.u32 %s76, %s77
      %p79 = scmp.eq.s32.totalorder %s78, 0
      %s81 = sadd.s32 %s80, 1
      %s82 = scalar_select %p79, %s80, %s81
      %p85 = pneg %p79
      %p86 = scmp.eq.s32.totalorder %s26, 1
      %p87 = por %p85, %p86
      %p88 = scmp.ne.s32.totalorder %s80, %s83
      %p89 = scmp.eq.s32.totalorder %s26, 0
      %p90 = por %p88, %p89
      %p91 = scmp.ne.s32.totalorder %s80, %s83
      %p92 = scmp.eq.s32.totalorder %s31, 1
      %p93 = por %p91, %p92
      %p94 = scmp.ne.s32.totalorder %s83, %s84
      %p95 = scmp.eq.s32.totalorder %s31, 0
      %p96 = por %p94, %p95
      %p97 = scmp.ne.s32.totalorder %s83, %s84
      %p98 = scmp.eq.s32.totalorder %s32, 1
      %p99 = por %p97, %p98
      %p101 = scmp.ne.s32.totalorder %s84, %s100
      %p102 = scmp.eq.s32.totalorder %s32, 0
      %p103 = por %p101, %p102
      %s104 = ssub.s32 %s33, %s45
      %s105 = ssub.s32 %s34, %s41
      %s106 = sor.u32 %s104, %s105
      %p107 = scmp.eq.s32.totalorder %s106, 0
      %s109 = sadd.s32 %s108, 1
      %s110 = scalar_select %p107, %s108, %s109
      %p113 = pneg %p107
      %p114 = scmp.eq.s32.totalorder %s26, 1
      %p115 = por %p113, %p114
      %p116 = scmp.ne.s32.totalorder %s108, %s111
      %p117 = scmp.eq.s32.totalorder %s26, 0
      %p118 = por %p116, %p117
      %p119 = scmp.ne.s32.totalorder %s108, %s111
      %p120 = scmp.eq.s32.totalorder %s31, 1
      %p121 = por %p119, %p120
      %p122 = scmp.ne.s32.totalorder %s111, %s112
      %p123 = scmp.eq.s32.totalorder %s31, 0
      %p124 = por %p122, %p123
      %p125 = scmp.ne.s32.totalorder %s111, %s112
      %p126 = scmp.eq.s32.totalorder %s32, 1
      %p127 = por %p125, %p126
      %p129 = scmp.ne.s32.totalorder %s112, %s128
      %p130 = scmp.eq.s32.totalorder %s32, 0
      %p131 = por %p129, %p130
      %p132 = scmp.le.s32.totalorder 1, %s26
      %p133 = scmp.lt.s32.totalorder %s26, 3
      %p134 = pnand %p132, %p133
      %p135 = pneg %p134
      // Predicated region
      $region9: #{tpu_custom_call.1} parent=5 // pred_check
        _
      $region10: #{tpu_custom_call.1} parent=5 // pred_check_branch
        %137 = sbr.rel (%p134) target = $region12
      $region11: #{tpu_custom_call.1} parent=5 // pred_region
        %s138 = ssub.s32 %s26, 1
      $region12: #{tpu_custom_call.1} parent=5 // pred_fallthru
        _
      %p139 = scmp.lt.s32.totalorder %s26, 2
      // Predicated region
      $region13: #{tpu_custom_call.1} parent=5 // pred_check
        %p140 = pneg %p139
      $region14: #{tpu_custom_call.1} parent=5 // pred_check_branch
        %142 = sbr.rel (%p140) target = $region16
      $region15: #{tpu_custom_call.1} parent=5 // pred_region
        // Predicated region
        $region17: #{tpu_custom_call.1} parent=15 // pred_check
          %p143 = pneg %p60
        $region18: #{tpu_custom_call.1} parent=15 // pred_check_branch
          %145 = sbr.rel (%p143) target = $region20
        $region19: #{tpu_custom_call.1} parent=15 // pred_region
          %s146 = sand.u32 %s50, 1
          %s147 = scalar_lea.sflag [#allocation6], %s146
          %s148 = sand.u32 %s50, 1
          %s149 = smul.addr %s148, 8
          %s150 = scalar_lea.vmem [#allocation5], %s149
          %s152 = ssub.s32 128, 128
          %153 = vsyncadd %s147, %s152
          %s154 = sadd.s32 %s34, %s33
          %s155 = smul.addr %s154, 128
          %s156 = scalar_lea.hbm %s2, %s155
          %s158 = sshll.u32 %s150, 4
          %s159 = int_to_ptr.vmem [resolvable:$true] %s158
          %161 = dma.hbm_to_vmem [thread:$0]  %s156, 128, %s159, %s147
        $region20: #{tpu_custom_call.1} parent=15 // pred_fallthru
          _
        // Predicated region
        $region21: #{tpu_custom_call.1} parent=15 // pred_check
          %p162 = pneg %p90
        $region22: #{tpu_custom_call.1} parent=15 // pred_check_branch
          %164 = sbr.rel (%p162) target = $region24
        $region23: #{tpu_custom_call.1} parent=15 // pred_region
          %s165 = sand.u32 %s80, 1
          %s166 = scalar_lea.sflag [#allocation9], %s165
          %s167 = sand.u32 %s80, 1
          %s168 = smul.addr %s167, 8
          %s169 = scalar_lea.vmem [#allocation8], %s168
          %s170 = sld [smem:[#allocation3 + %s33]]
          %s172 = ssub.s32 128, 128
          %173 = vsyncadd %s166, %s172
          %s174 = sadd.s32 %s34, %s170
          %s175 = smul.addr %s174, 128
          %s176 = scalar_lea.hbm %s3, %s175
          %s178 = sshll.u32 %s169, 4
          %s179 = int_to_ptr.vmem [resolvable:$true] %s178
          %181 = dma.hbm_to_vmem [thread:$0]  %s176, 128, %s179, %s166
        $region24: #{tpu_custom_call.1} parent=15 // pred_fallthru
          _
      $region16: #{tpu_custom_call.1} parent=5 // pred_fallthru
        _
      %p182 = scmp.le.s32.totalorder 1, %s26
      %p183 = scmp.lt.s32.totalorder %s26, 3
      %p184 = pnand %p182, %p183
      %p185 = pneg %p184
      // Predicated region
      $region25: #{tpu_custom_call.1} parent=5 // pred_check
        _
      $region26: #{tpu_custom_call.1} parent=5 // pred_check_branch
        %187 = sbr.rel (%p184) target = $region28
      $region27: #{tpu_custom_call.1} parent=5 // pred_region
        %s188 = ssub.s32 %s26, 1
        %s189 = sand.u32 %s53, 1
        %s190 = scalar_lea.sflag [#allocation6], %s189
        %s191 = sand.u32 %s53, 1
        %s192 = smul.addr %s191, 8
        %s193 = scalar_lea.vmem [#allocation5], %s192
        // Predicated region
        $region29: #{tpu_custom_call.1} parent=27 // pred_check
          %p194 = pneg %p66
        $region30: #{tpu_custom_call.1} parent=27 // pred_check_branch
          %196 = sbr.rel (%p194) target = $region32
        $region31: #{tpu_custom_call.1} parent=27 // pred_region
          %197 = dma.done %s190, 128
        $region32: #{tpu_custom_call.1} parent=27 // pred_fallthru
          _
        %s198 = sand.u32 %s83, 1
        %s199 = scalar_lea.sflag [#allocation9], %s198
        %s200 = sand.u32 %s83, 1
        %s201 = smul.addr %s200, 8
        %s202 = scalar_lea.vmem [#allocation8], %s201
        // Predicated region
        $region33: #{tpu_custom_call.1} parent=27 // pred_check
          %p203 = pneg %p96
        $region34: #{tpu_custom_call.1} parent=27 // pred_check_branch
          %205 = sbr.rel (%p203) target = $region36
        $region35: #{tpu_custom_call.1} parent=27 // pred_region
          %206 = dma.done %s199, 128
        $region36: #{tpu_custom_call.1} parent=27 // pred_fallthru
          _
        %s207 = sand.u32 %s53, 1
        %s208 = scalar_lea.sflag [#allocation6], %s207
        %s209 = sand.u32 %s53, 1
        %s210 = smul.addr %s209, 8
        %s211 = scalar_lea.vmem [#allocation5], %s210
        %p212 = pneg %p66
        %p213 = pneg %p63
        %s214 = sand.u32 %s83, 1
        %s215 = scalar_lea.sflag [#allocation9], %s214
        %s216 = sand.u32 %s83, 1
        %s217 = smul.addr %s216, 8
        %s218 = scalar_lea.vmem [#allocation8], %s217
        %p219 = pneg %p96
        %p220 = pneg %p93
        %p221 = pneg %p124
        %p222 = pneg %p121
        %s223 = sand.u32 %s111, 1
        %s224 = scalar_lea.sflag [#allocation7], %s223
        %s225 = sand.u32 %s111, 1
        %s226 = smul.addr %s225, 8
        %s227 = scalar_lea.vmem [#allocation10], %s226
        %s228 = sld [smem:[#allocation3 + %s35]]
        %s229 = sld [smem:[#allocation4]]
        %v230 = vld [vmem:[%s193] sm:$0xff]
        %v231 = vstv %s229
        %v232 = vmul.f32 %v231, %v230
        %s233 = ssub.f32 1.0, %s229
        %v234 = vld [vmem:[%s202] sm:$0xff]
        %v235 = vstv %s233
        %v236 = vmul.f32 %v235, %v234
        %v237 = vadd.f32 %v232, %v236
        %238 = vst [vmem:[%s227] sm:$0xff] %v237
        %s239 = sand.u32 %s111, 1
        %s240 = scalar_lea.sflag [#allocation7], %s239
        %s241 = sand.u32 %s111, 1
        %s242 = smul.addr %s241, 8
        %s243 = scalar_lea.vmem [#allocation10], %s242
        // Predicated region
        $region37: #{tpu_custom_call.1} parent=27 // pred_check
          %p244 = pneg %p121
        $region38: #{tpu_custom_call.1} parent=27 // pred_check_branch
          %246 = sbr.rel (%p244) target = $region40
        $region39: #{tpu_custom_call.1} parent=27 // pred_region
          %s248 = ssub.s32 128, 128
          %249 = vsyncadd %s240, %s248
          %s250 = sadd.s32 %s36, %s35
          %s251 = smul.addr %s250, 128
          %s252 = scalar_lea.hbm %s4, %s251
          %s254 = sshll.u32 %s243, 4
          %s255 = int_to_ptr.vmem [resolvable:$true] %s254
          %257 = dma.vmem_to_hbm [thread:$0]  %s255, 128, %s252, %s240
        $region40: #{tpu_custom_call.1} parent=27 // pred_fallthru
          _
      $region28: #{tpu_custom_call.1} parent=5 // pred_fallthru
        _
      %p258 = scmp.le.s32.totalorder 2, %s26
      // Predicated region
      $region41: #{tpu_custom_call.1} parent=5 // pred_check
        %p259 = pneg %p258
      $region42: #{tpu_custom_call.1} parent=5 // pred_check_branch
        %261 = sbr.rel (%p259) target = $region44
      $region43: #{tpu_custom_call.1} parent=5 // pred_region
        %s262 = ssub.s32 %s26, 2
        // Predicated region
        $region45: #{tpu_custom_call.1} parent=43 // pred_check
          %p263 = pneg %p127
        $region46: #{tpu_custom_call.1} parent=43 // pred_check_branch
          %265 = sbr.rel (%p263) target = $region48
        $region47: #{tpu_custom_call.1} parent=43 // pred_region
          %s266 = sand.u32 %s112, 1
          %s267 = scalar_lea.sflag [#allocation7], %s266
          %s268 = sand.u32 %s112, 1
          %s269 = smul.addr %s268, 8
          %s270 = scalar_lea.vmem [#allocation10], %s269
          %271 = dma.done %s267, 128
        $region48: #{tpu_custom_call.1} parent=43 // pred_fallthru
          _
      $region44: #{tpu_custom_call.1} parent=5 // pred_fallthru
        _
    $region6: #{tpu_custom_call.1} parent=1 // loop_footer
      %s30 = sadd.s32 1, %s26
    $region7: #{tpu_custom_call.1} parent=1 // loop_footer_branch
      %25 = sbr.rel target = $region3
    $region8: #{tpu_custom_call.1} parent=1 // loop_exit
      _
    %272 = vsyncpa [#allocation6], 1
    %s273 = scalar_lea.sflag [#allocation6], 1
    %274 = vsyncpa %s273, 1
    %275 = vsyncpa [#allocation9], 1
    %s276 = scalar_lea.sflag [#allocation9], 1
    %277 = vsyncpa %s276, 1
    %278 = vsyncpa [#allocation7], 1
    %s279 = scalar_lea.sflag [#allocation7], 1
    %280 = vsyncpa %s279, 1

</llo_original>
